<compile_context>
chip_gen: v6e
topology: v6e:2x2x1
jax: 0.10.0
libtpu: 0.0.40
codegen_flags: <defaults>
</compile_context>

<pallas_src>
import jax
import jax.numpy as jnp
from jax.experimental import pallas as pl
from jax.experimental.pallas import tpu as pltpu


def _round_up(x, m):
    return ((x + m - 1) // m) * m


def _add_conv2d_matmul_kernel(w_ref, p_ref, o_ref):
    """One (batch element, spatial M-tile) per grid step: a single MXU matmul.

    w_ref: (Cout_pad, Kpad)      combined (dense+sparse) im2col weight;
                                 block index is constant -> DMA'd once.
    p_ref: (1, Kpad, TILE_M)     im2col patches tile, spatial (lane) dense.
    o_ref: (1, Cout_pad, TILE_M) output tile, spatial lane-dense (unmasked
                                 full-lane stores; Cout only sublane-padded).
    """
    acc = jnp.dot(w_ref[...], p_ref[0],
                  preferred_element_type=jnp.float32)     # (Cout_pad, TILE_M)
    o_ref[...] = acc[None].astype(o_ref.dtype)


def _pick_tile_m(m):
    """Spatial tile: multiple of 128 lanes; prefer 256/512 to fill the larger
    MXU on v6e/v7x and amortize the ~0.35us per-grid-step overhead."""
    for cand in (512, 256, 128):
        if m >= cand:
            return cand
    return 128


def add_conv2d_forward(x_nchw, dense_w_oihw, sparse_w_oihw, *,
                       stride=1, padding=0,
                       compute_dtype=jnp.float32, out_dtype=None,
                       tile_m=None):
    """Mimics add_conv2d.forward(x) with bias=False (eval mode).

    x_nchw        : (N, Cin, H, W)     -- PyTorch NCHW input
    dense_w_oihw  : (Cout, Cin, KH, KW)
    sparse_w_oihw : (Cout, Cin, KH, KW)
    returns       : (N, Cout, Ho, Wo)  -- PyTorch NCHW output (dtype=out_dtype)
    """
    N, Cin, H, W = x_nchw.shape
    Cout, _, KH, KW = dense_w_oihw.shape

    Hp, Wp = H + 2 * padding, W + 2 * padding
    Ho = (Hp - KH) // stride + 1
    Wo = (Wp - KW) // stride + 1
    M = Ho * Wo
    K = KH * KW * Cin

    if out_dtype is None:
        out_dtype = x_nchw.dtype
    if tile_m is None:
        tile_m = _pick_tile_m(M)
    assert tile_m % 128 == 0, "tile_m must be a multiple of 128 lanes"

    Mpad = _round_up(M, tile_m)          # no ragged spatial tiles
    Kpad = _round_up(K, 8)               # sublane-aligned reduction axis
    Cout_pad = _round_up(Cout, 8)        # sublane-aligned output rows only

    # ---- loop-invariant weight work, hoisted out of the grid ----
    # eval-mode Dropout(0.05) is identity, so weight = dense + sparse.
    w = dense_w_oihw + sparse_w_oihw                                 # OIHW
    # OIHW -> (Cout, KH, KW, Cin) -> (Cout, K) with k = (i*KW + j)*Cin + c.
    w = jnp.transpose(w, (0, 2, 3, 1)).reshape(Cout, K)
    w = jnp.pad(w, ((0, Cout_pad - Cout), (0, Kpad - K)))
    w = w.astype(compute_dtype)

    # ---- wrapper-side im2col (pure layout plumbing) ----
    # patches[n, (i*KW+j)*Cin + c, ho*Wo + wo] = x_pad[n, c, ho*s + i, wo*s + j]
    xp = jnp.pad(x_nchw, ((0, 0), (0, 0),
                          (padding, padding), (padding, padding)))
    taps = []
    for i in range(KH):
        for j in range(KW):
            i_hi = i + (Ho - 1) * stride + 1
            j_hi = j + (Wo - 1) * stride + 1
            taps.append(xp[:, :, i:i_hi:stride, j:j_hi:stride])      # (N,Cin,Ho,Wo)
    patches = jnp.stack(taps, axis=1).reshape(N, K, M)               # (N,K,M)
    patches = jnp.pad(patches, ((0, 0), (0, Kpad - K), (0, Mpad - M)))
    patches = patches.astype(compute_dtype)

    grid = (N, Mpad // tile_m)           # both axes independent ("parallel")

    out = pl.pallas_call(
        _add_conv2d_matmul_kernel,
        out_shape=jax.ShapeDtypeStruct((N, Cout_pad, Mpad), out_dtype),
        grid=grid,
        in_specs=[
            # Combined weight: block index never changes -> DMA'd once.
            pl.BlockSpec((Cout_pad, Kpad), lambda n, m: (0, 0)),
            # Patches tile: spatial lane-dense, K sublane-dense.
            pl.BlockSpec((1, Kpad, tile_m), lambda n, m: (n, 0, m)),
        ],
        out_specs=pl.BlockSpec((1, Cout_pad, tile_m), lambda n, m: (n, 0, m)),
        compiler_params=pltpu.CompilerParams(
            # Independent grid axes -> shard across v7x's 2 TensorCores.
            dimension_semantics=("parallel", "parallel"),
            # Explicit scoped-VMEM cap, safe on v5e/v6e/v7x (tiles are tiny).
            vmem_limit_bytes=32 * 1024 * 1024,
        ),
    )(w, patches)

    # Drop sublane/lane padding and fold the spatial axis back to (Ho, Wo).
    # Output is already channel-major -> NO final NCHW transpose needed.
    return out[:, :Cout, :M].reshape(N, Cout, Ho, Wo)


if __name__ == "__main__":
    # Module config: in_channels=4, out_channels=8, kernel_size=3, stride=1,
    # padding=1, bias=False, scale=1.
    in_channels, out_channels, kernel_size = 4, 8, 3
    stride, padding = 1, 1

    key = jax.random.PRNGKey(0)
    k_x, k_dense, k_sparse2 = jax.random.split(key, 3)

    x = jax.random.normal(k_x, (2, in_channels, 16, 16), dtype=jnp.float32)

    # additive_decomposed_weight((out, in, k, k), None, scale=1):
    #   dense_weight   ~ randn(shape)
    #   sparse_weight1 = zeros(shape)      (used path: self.sparse1 == True)
    #   sparse_weight2 ~ randn(shape)      (unused in this forward path)
    wshape = (out_channels, in_channels, kernel_size, kernel_size)
    dense_weight = jax.random.normal(k_dense, wshape, dtype=jnp.float32)
    sparse_weight1 = jnp.zeros(wshape, dtype=jnp.float32)
    _sparse_weight2 = jax.random.normal(k_sparse2, wshape, dtype=jnp.float32)
    # TODO(synk): training-mode Dropout(0.05) on dense_weight not modeled; eval-mode identity used.
    # TODO(synk): bias=True path (additive_decomposed_weight bias) not implemented; module default is bias=False.

    # Reference check against XLA's conv (same semantics as F.conv2d).
    y_ref = jax.lax.conv_general_dilated(
        x, dense_weight + sparse_weight1,
        window_strides=(stride, stride),
        padding=((padding, padding), (padding, padding)),
        dimension_numbers=("NCHW", "OIHW", "NCHW"),
    )

    # Parity path (default): f32 operands, f32 output, tight tolerance.
    # tile_m=128 exercises a real 2x2 grid (2 batch x 2 spatial tiles).
    y_f32 = add_conv2d_forward(x, dense_weight, sparse_weight1,
                               stride=stride, padding=padding,
                               compute_dtype=jnp.float32, tile_m=128)
    y_f32 = jax.block_until_ready(y_f32)
    assert y_f32.shape == y_ref.shape
    assert jnp.allclose(y_f32, y_ref, atol=1e-4, rtol=1e-4)

    # Fast inference path: bf16 operands + bf16 output (expected ~1e-2 error
    # from bf16 quantization of activations/weights; f32 MXU accumulation).
    y_bf16 = add_conv2d_forward(x, dense_weight, sparse_weight1,
                                stride=stride, padding=padding,
                                compute_dtype=jnp.bfloat16,
                                out_dtype=jnp.bfloat16)
    y_bf16 = jax.block_until_ready(y_bf16)
    assert y_bf16.shape == y_ref.shape
    assert jnp.allclose(y_bf16.astype(jnp.float32), y_ref,
                        atol=5e-2, rtol=5e-2)

    print("KERNEL_OK")
</pallas_src>

<mosaic_0001>
module attributes {stable_mosaic.version = 11 : i64} {
  func.func @_add_conv2d_matmul_kernel(%arg0: i32, %arg1: i32, %arg2: memref<8x40xf32, #tpu.memory_space<vmem>>, %arg3: memref<1x40x128xf32, #tpu.memory_space<vmem>>, %arg4: memref<1x8x128xf32, #tpu.memory_space<vmem>>) attributes {dimension_semantics = [#tpu.dimension_semantics<parallel>, #tpu.dimension_semantics<parallel>], iteration_bounds = array<i64: 2, 2>, scalar_prefetch = 0 : i64, scratch_operands = 0 : i64, tpu.core_type = #tpu.core_type<tc>, window_params = [{pipeline_mode = #tpu.pipeline_mode<synchronous>, transform_indices = @transform_0, window_bounds = array<i64: 8, 40>}, {transform_indices = @transform_1, window_bounds = array<i64: 1, 40, 128>}, {transform_indices = @transform_2, window_bounds = array<i64: 1, 8, 128>}]} {
    %c0 = arith.constant 0 : index
    %c0_0 = arith.constant 0 : index
    %0 = vector.load %arg2[%c0, %c0_0] : memref<8x40xf32, #tpu.memory_space<vmem>>, vector<8x40xf32>
    %c0_1 = arith.constant 0 : index
    %c0_2 = arith.constant 0 : index
    %c0_3 = arith.constant 0 : index
    %1 = vector.load %arg3[%c0_1, %c0_2, %c0_3] : memref<1x40x128xf32, #tpu.memory_space<vmem>>, vector<1x40x128xf32>
    %2 = vector.shape_cast %1 : vector<1x40x128xf32> to vector<40x128xf32>
    %cst = arith.constant dense<0.000000e+00> : vector<8x128xf32>
    %3 = tpu.matmul %0, %2, %cst {dimension_numbers = #tpu.dot_dimension_numbers<[1], [0], [0], [1], [0, 0, 1, 1], [], []>} : vector<8x40xf32>, vector<40x128xf32>, vector<8x128xf32> -> vector<8x128xf32>
    %4 = vector.shape_cast %3 : vector<8x128xf32> to vector<1x8x128xf32>
    %c0_4 = arith.constant 0 : index
    %c0_5 = arith.constant 0 : index
    %c0_6 = arith.constant 0 : index
    %5 = vector.load %arg4[%c0_4, %c0_5, %c0_6] : memref<1x8x128xf32, #tpu.memory_space<vmem>>, vector<1x8x128xf32>
    tpu.vector_store %arg4[%c0_4, %c0_5, %c0_6], %4 {strides = array<i32>} : memref<1x8x128xf32, #tpu.memory_space<vmem>>, vector<1x8x128xf32>,
    return
  }
  func.func @transform_0(%arg0: i32, %arg1: i32) -> (i32, i32) {
    %c0_i32 = arith.constant 0 : i32
    %c0_i32_0 = arith.constant 0 : i32
    %c0_i32_1 = arith.constant 0 : i32
    return %c0_i32, %c0_i32_0 : i32, i32
  }
  func.func @transform_1(%arg0: i32, %arg1: i32) -> (i32, i32, i32) {
    %c0_i32 = arith.constant 0 : i32
    %c0_i32_0 = arith.constant 0 : i32
    return %arg0, %c0_i32, %arg1 : i32, i32, i32
  }
  func.func @transform_2(%arg0: i32, %arg1: i32) -> (i32, i32, i32) {
    %c0_i32 = arith.constant 0 : i32
    %c0_i32_0 = arith.constant 0 : i32
    return %arg0, %c0_i32, %arg1 : i32, i32, i32
  }
}

</mosaic_0001>

<llo_original>
// kernel: tpu_custom_call.1
$region0: #{tpu_custom_call.1}
  #allocation0 [shape = 'u32[]', space=smem, size = 0x4, offset = 0x4, fixed_abs, tag = 'smem constant byte address 0x4 - core index']
  #allocation1 [shape = 'u32[144,128]{1,0:T(1,128)}', space=vmem, size = 0x12000, scoped, tag = 'internal scratch']
  %s0 = inlined_call_operand.hbm [shape: f32[8,40], index: 0, kind: input, shape index: {}]
  %s1 = inlined_call_operand.hbm [shape: f32[2,40,256], index: 1, kind: input, shape index: {}]
  %s2 = inlined_call_operand.hbm [shape: f32[2,8,256], index: 2, kind: output, shape index: {}]
  %s3 = sld [smem:[#allocation0]]
  $region49: #{tpu_custom_call.1} parent=0
    _
  %s5 = ssub.s32 1, %s3
  %s6 = scalar_select 0, %s5, %s3
  $region1: #{tpu_custom_call.1} parent=0
    #allocation2 [shape = 'u8[4096]{0}', space=vmem, size = 0x1000, scoped, tag = 'input window, operand 0, single buffered']
    #allocation3 [shape = 's32[2]{0}', space=sflag, size = 0x8, scoped, tag = 'scoped memory for tpu_custom_call.1']
    #allocation4 [shape = 's32[2]{0}', space=sflag, size = 0x8, scoped, tag = 'scoped memory for tpu_custom_call.1']
    #allocation5 [shape = 'u8[40960]{0}', space=vmem, size = 0xa000, scoped, tag = 'input window, operand 1']
    #allocation6 [shape = 's32[2]{0}', space=sflag, size = 0x8, scoped, tag = 'scoped memory for tpu_custom_call.1']
    #allocation7 [shape = 'u8[8192]{0}', space=vmem, size = 0x2000, scoped, tag = 'output window, operand 0']
    %7 = vsyncpa [#allocation3], 0
    %8 = vsyncpa [#allocation6], 0
    %s9 = scalar_lea.sflag [#allocation6], 1
    %10 = vsyncpa %s9, 0
    %11 = vsyncpa [#allocation4], 0
    %s12 = scalar_lea.sflag [#allocation4], 1
    %13 = vsyncpa %s12, 0
    loop: start=0, step=1, limit=6
    $region2: #{tpu_custom_call.1} parent=1 // loop_pre_header
      _
    $region3: #{tpu_custom_call.1} parent=1 // loop_header
      %s15 = sphi 0, %s19
      %p16 = scmp.ge.s32.totalorder %s15, 6
      %s22 = sphi 0, %s34
      %s23 = sphi 0, %s30
      %s24 = sphi 0, %s22
      %s25 = sphi 0, %s23
      %s26 = sphi 0, %s24
      %s27 = sphi 0, %s25
      %s35 = sphi 0, %s35
      %s37 = sphi 0, %s35
      %s38 = sphi 0, %s37
      %s52 = sphi 0, %s38
      %s60 = sphi 0, %s62
      %s63 = sphi 0, %s60
      %s64 = sphi 0, %s63
      %s80 = sphi 0, %s64
      %s88 = sphi 0, %s90
      %s91 = sphi 0, %s88
      %s92 = sphi 0, %s91
      %s108 = sphi 0, %s92
    $region4: #{tpu_custom_call.1} parent=1 // loop_header_branch
      %18 = sbr.rel (%p16) target = $region8
    $region5: #{tpu_custom_call.1} parent=1 // loop_body
      %s20 = ssub.s32 %s15, 1
      %s21 = ssub.s32 %s15, 2
      %s28 = sadd.s32 1, %s23
      %p29 = scmp.ge.s32.totalorder %s28, 2
      %s30 = scalar_select %p29, 0, %s28
      %s31 = sadd.s32 1, %s22
      %s32 = scalar_select %p29, %s31, %s22
      %p33 = scmp.ge.s32.totalorder %s32, 2
      %s34 = scalar_select %p33, 0, %s32
      %s36 = sadd.s32 %s35, 1
      %p39 = scmp.eq.s32.totalorder %s15, 3
      %p40 = scmp.ne.s32.totalorder %s35, %s37
      %p41 = scmp.eq.s32.totalorder %s15, 0
      %p42 = por %p40, %p41
      %p43 = scmp.ne.s32.totalorder %s35, %s37
      %p44 = scmp.eq.s32.totalorder %s20, 3
      %p45 = por %p43, %p44
      %p46 = scmp.ne.s32.totalorder %s37, %s38
      %p47 = scmp.eq.s32.totalorder %s20, 0
      %p48 = por %p46, %p47
      %p49 = scmp.ne.s32.totalorder %s37, %s38
      %p50 = scmp.eq.s32.totalorder %s21, 3
      %p51 = por %p49, %p50
      %p53 = scmp.ne.s32.totalorder %s38, %s52
      %p54 = scmp.eq.s32.totalorder %s21, 0
      %p55 = por %p53, %p54
      %s56 = ssub.s32 %s22, %s34
      %s57 = ssub.s32 %s23, %s30
      %s58 = sor.u32 %s56, %s57
      %p59 = scmp.eq.s32.totalorder %s58, 0
      %s61 = sadd.s32 %s60, 1
      %s62 = scalar_select %p59, %s60, %s61
      %p65 = pneg %p59
      %p66 = scmp.eq.s32.totalorder %s15, 3
      %p67 = por %p65, %p66
      %p68 = scmp.ne.s32.totalorder %s60, %s63
      %p69 = scmp.eq.s32.totalorder %s15, 0
      %p70 = por %p68, %p69
      %p71 = scmp.ne.s32.totalorder %s60, %s63
      %p72 = scmp.eq.s32.totalorder %s20, 3
      %p73 = por %p71, %p72
      %p74 = scmp.ne.s32.totalorder %s63, %s64
      %p75 = scmp.eq.s32.totalorder %s20, 0
      %p76 = por %p74, %p75
      %p77 = scmp.ne.s32.totalorder %s63, %s64
      %p78 = scmp.eq.s32.totalorder %s21, 3
      %p79 = por %p77, %p78
      %p81 = scmp.ne.s32.totalorder %s64, %s80
      %p82 = scmp.eq.s32.totalorder %s21, 0
      %p83 = por %p81, %p82
      %s84 = ssub.s32 %s22, %s34
      %s85 = ssub.s32 %s23, %s30
      %s86 = sor.u32 %s84, %s85
      %p87 = scmp.eq.s32.totalorder %s86, 0
      %s89 = sadd.s32 %s88, 1
      %s90 = scalar_select %p87, %s88, %s89
      %p93 = pneg %p87
      %p94 = scmp.eq.s32.totalorder %s15, 3
      %p95 = por %p93, %p94
      %p96 = scmp.ne.s32.totalorder %s88, %s91
      %p97 = scmp.eq.s32.totalorder %s15, 0
      %p98 = por %p96, %p97
      %p99 = scmp.ne.s32.totalorder %s88, %s91
      %p100 = scmp.eq.s32.totalorder %s20, 3
      %p101 = por %p99, %p100
      %p102 = scmp.ne.s32.totalorder %s91, %s92
      %p103 = scmp.eq.s32.totalorder %s20, 0
      %p104 = por %p102, %p103
      %p105 = scmp.ne.s32.totalorder %s91, %s92
      %p106 = scmp.eq.s32.totalorder %s21, 3
      %p107 = por %p105, %p106
      %p109 = scmp.ne.s32.totalorder %s92, %s108
      %p110 = scmp.eq.s32.totalorder %s21, 0
      %p111 = por %p109, %p110
      %p112 = scmp.le.s32.totalorder 1, %s15
      %p113 = scmp.lt.s32.totalorder %s15, 5
      %p114 = pnand %p112, %p113
      %p115 = pneg %p114
      // Predicated region
      $region9: #{tpu_custom_call.1} parent=5 // pred_check
        _
      $region10: #{tpu_custom_call.1} parent=5 // pred_check_branch
        %117 = sbr.rel (%p114) target = $region12
      $region11: #{tpu_custom_call.1} parent=5 // pred_region
        %s118 = ssub.s32 %s15, 1
        // Predicated region
        $region13: #{tpu_custom_call.1} parent=11 // pred_check
          %p119 = pneg %p48
        $region14: #{tpu_custom_call.1} parent=11 // pred_check_branch
          %121 = sbr.rel (%p119) target = $region16
        $region15: #{tpu_custom_call.1} parent=11 // pred_region
          %s123 = ssub.s32 128, 128
          %124 = vsyncadd [#allocation3], %s123
          %s126 = sshll.u32 [#allocation2], 4
          %s127 = int_to_ptr.vmem [resolvable:$true] %s126
          %129 = dma.hbm_to_vmem [thread:$0]  %s0, 128, %s127, [#allocation3]
        $region16: #{tpu_custom_call.1} parent=11 // pred_fallthru
          _
      $region12: #{tpu_custom_call.1} parent=5 // pred_fallthru
        _
      %p130 = scmp.lt.s32.totalorder %s15, 4
      // Predicated region
      $region17: #{tpu_custom_call.1} parent=5 // pred_check
        %p131 = pneg %p130
      $region18: #{tpu_custom_call.1} parent=5 // pred_check_branch
        %133 = sbr.rel (%p131) target = $region20
      $region19: #{tpu_custom_call.1} parent=5 // pred_region
        // Predicated region
        $region21: #{tpu_custom_call.1} parent=19 // pred_check
          %p134 = pneg %p70
        $region22: #{tpu_custom_call.1} parent=19 // pred_check_branch
          %136 = sbr.rel (%p134) target = $region24
        $region23: #{tpu_custom_call.1} parent=19 // pred_region
          %s137 = sand.u32 %s60, 1
          %s138 = scalar_lea.sflag [#allocation6], %s137
          %s139 = sand.u32 %s60, 1
          %s140 = smul.addr %s139, 40
          %s141 = scalar_lea.vmem [#allocation5], %s140
          %s143 = ssub.s32 640, 640
          %144 = vsyncadd %s138, %s143
          %s145 = smul.addr %s22, 10
          %s146 = sadd.s32 %s23, %s145
          %s147 = smul.addr %s146, 128
          %s148 = scalar_lea.hbm %s1, %s147
          %s149 = sshll.u32 %s141, 4
          %s150 = int_to_ptr.vmem [resolvable:$true] %s149
          %155 = dma.hbm_to_vmem [thread:$0]  %s148, 640, %s150, %s138, 256, 128, 8
        $region24: #{tpu_custom_call.1} parent=19 // pred_fallthru
          _
      $region20: #{tpu_custom_call.1} parent=5 // pred_fallthru
        _
      %p156 = scmp.le.s32.totalorder 1, %s15
      %p157 = scmp.lt.s32.totalorder %s15, 5
      %p158 = pnand %p156, %p157
      %p159 = pneg %p158
      // Predicated region
      $region25: #{tpu_custom_call.1} parent=5 // pred_check
        _
      $region26: #{tpu_custom_call.1} parent=5 // pred_check_branch
        %161 = sbr.rel (%p158) target = $region28
      $region27: #{tpu_custom_call.1} parent=5 // pred_region
        %s162 = ssub.s32 %s15, 1
        // Predicated region
        $region29: #{tpu_custom_call.1} parent=27 // pred_check
          %p163 = pneg %p48
        $region30: #{tpu_custom_call.1} parent=27 // pred_check_branch
          %165 = sbr.rel (%p163) target = $region32
        $region31: #{tpu_custom_call.1} parent=27 // pred_region
          %166 = dma.done [#allocation3], 128
        $region32: #{tpu_custom_call.1} parent=27 // pred_fallthru
          _
        %s167 = sand.u32 %s63, 1
        %s168 = scalar_lea.sflag [#allocation6], %s167
        %s169 = sand.u32 %s63, 1
        %s170 = smul.addr %s169, 40
        %s171 = scalar_lea.vmem [#allocation5], %s170
        // Predicated region
        $region33: #{tpu_custom_call.1} parent=27 // pred_check
          %p172 = pneg %p76
        $region34: #{tpu_custom_call.1} parent=27 // pred_check_branch
          %174 = sbr.rel (%p172) target = $region36
        $region35: #{tpu_custom_call.1} parent=27 // pred_region
          %175 = dma.done %s168, 640
        $region36: #{tpu_custom_call.1} parent=27 // pred_fallthru
          _
        %p176 = pneg %p48
        %p177 = pneg %p45
        %s178 = sand.u32 %s63, 1
        %s179 = scalar_lea.sflag [#allocation6], %s178
        %s180 = sand.u32 %s63, 1
        %s181 = smul.addr %s180, 40
        %s182 = scalar_lea.vmem [#allocation5], %s181
        %p183 = pneg %p76
        %p184 = pneg %p73
        %p185 = pneg %p104
        %p186 = pneg %p101
        %s187 = sand.u32 %s91, 1
        %s188 = scalar_lea.sflag [#allocation4], %s187
        %s189 = sand.u32 %s91, 1
        %s190 = smul.addr %s189, 8
        %s191 = scalar_lea.vmem [#allocation7], %s190
        %v192 = vld [vmem:[#allocation2] sm:$0xff]
        %v193 = vld [vmem:[%s171] sm:$0xff]
        %v194 = vld [vmem:[%s171 + $0x8] sm:$0xff]
        %v195 = vld [vmem:[%s171 + $0x10] sm:$0xff]
        %v196 = vld [vmem:[%s171 + $0x18] sm:$0xff]
        %v197 = vld [vmem:[%s171 + $0x20] sm:$0xff]
        %vm198 = vcmask 326656
        %v200 = vsel %vm198, %v192, 0
        %202 = vmatprep.subr.mxu0 0.0
        %203 = vmatpush1.msra.mxu0 0.0
        %204 = vmatprep.subr.mxu0 0.0
        %205 = vmatpush1.msra.mxu0 0.0
        %206 = vmatprep.subr.mxu0 0.0
        %207 = vmatpush1.msra.mxu0 0.0
        %208 = vmatprep.subr.mxu0 0.0
        %209 = vmatpush1.msra.mxu0 0.0
        %210 = vmatprep.subr.mxu0 0.0
        %211 = vmatpush1.msra.mxu0 0.0
        %212 = vmatprep.subr.mxu0 0.0
        %213 = vmatpush1.msra.mxu0 0.0
        %214 = vmatprep.subr.mxu0 0.0
        %215 = vmatpush1.msra.mxu0 0.0
        %216 = vmatprep.subr.mxu0 0.0
        %217 = vmatpush1.msra.mxu0 0.0
        %218 = vmatprep.subr.mxu0 0.0
        %219 = vmatpush1.msra.mxu0 0.0
        %220 = vmatprep.subr.mxu0 0.0
        %221 = vmatpush1.msra.mxu0 0.0
        %222 = vmatprep.subr.mxu0 0.0
        %223 = vmatpush1.msra.mxu0 0.0
        %224 = vmatprep.subr.mxu0 0.0
        %225 = vmatpush1.msra.mxu0 %v197
        %226 = vmatprep.subr.mxu0 0.0
        %227 = vmatpush1.msra.mxu0 %v196
        %228 = vmatprep.subr.mxu0 0.0
        %229 = vmatpush1.msra.mxu0 %v195
        %230 = vmatprep.subr.mxu0 0.0
        %231 = vmatpush1.msra.mxu0 %v194
        %232 = vmatprep.subr.mxu0 0.0
        %233 = vmatpush1.msra.mxu0 %v193
        %234 = vmatprep.subr.mxu0 0.0
        %235 = vmatpush2.msra.mxu0 0.0
        %236 = vmatprep.subr.mxu0 0.0
        %237 = vmatpush2.msra.mxu0 0.0
        %238 = vmatprep.subr.mxu0 0.0
        %239 = vmatpush2.msra.mxu0 0.0
        %240 = vmatprep.subr.mxu0 0.0
        %241 = vmatpush2.msra.mxu0 0.0
        %242 = vmatprep.subr.mxu0 0.0
        %243 = vmatpush2.msra.mxu0 0.0
        %244 = vmatprep.subr.mxu0 0.0
        %245 = vmatpush2.msra.mxu0 0.0
        %246 = vmatprep.subr.mxu0 0.0
        %247 = vmatpush2.msra.mxu0 0.0
        %248 = vmatprep.subr.mxu0 0.0
        %249 = vmatpush2.msra.mxu0 0.0
        %250 = vmatprep.subr.mxu0 0.0
        %251 = vmatpush2.msra.mxu0 0.0
        %252 = vmatprep.subr.mxu0 0.0
        %253 = vmatpush2.msra.mxu0 0.0
        %254 = vmatprep.subr.mxu0 0.0
        %255 = vmatpush2.msra.mxu0 0.0
        %256 = vmatprep.subr.mxu0 0.0
        %257 = vmatpush2.msra.mxu0 0.0
        %258 = vmatprep.subr.mxu0 0.0
        %259 = vmatpush2.msra.mxu0 0.0
        %260 = vmatprep.subr.mxu0 0.0
        %261 = vmatpush2.msra.mxu0 0.0
        %262 = vmatprep.subr.mxu0 0.0
        %263 = vmatpush2.msra.mxu0 0.0
        %264 = vmatprep.subr.mxu0 0.0
        %265 = vmatpush2.msra.mxu0 0.0
        %266 = vmatprep.mubr.f32.mxu0 0.0
        %267 = vmatmul.mubr.f32.gmra.mxu0 %v200
        %v268 = vpop.f32.mrf.mxu0
        %v269 = vadd.f32 0.0, %v268
        %v270 = vpop.f32.mrf.mxu0
        %271 = vdwg.mxu0
        %272 = vst [vmem:[%s191] sm:$0xff] %v269
        %s273 = sand.u32 %s91, 1
        %s274 = scalar_lea.sflag [#allocation4], %s273
        %s275 = sand.u32 %s91, 1
        %s276 = smul.addr %s275, 8
        %s277 = scalar_lea.vmem [#allocation7], %s276
        // Predicated region
        $region37: #{tpu_custom_call.1} parent=27 // pred_check
          %p278 = pneg %p101
        $region38: #{tpu_custom_call.1} parent=27 // pred_check_branch
          %280 = sbr.rel (%p278) target = $region40
        $region39: #{tpu_custom_call.1} parent=27 // pred_region
          %s282 = ssub.s32 128, 128
          %283 = vsyncadd %s274, %s282
          %s284 = smul.addr %s24, 2
          %s285 = sadd.s32 %s25, %s284
          %s286 = smul.addr %s285, 128
          %s287 = scalar_lea.hbm %s2, %s286
          %s289 = sshll.u32 %s277, 4
          %s290 = int_to_ptr.vmem [resolvable:$true] %s289
          %292 = dma.vmem_to_hbm [thread:$0]  %s290, 128, %s287, %s274
        $region40: #{tpu_custom_call.1} parent=27 // pred_fallthru
          _
      $region28: #{tpu_custom_call.1} parent=5 // pred_fallthru
        _
      %p293 = scmp.le.s32.totalorder 2, %s15
      // Predicated region
      $region41: #{tpu_custom_call.1} parent=5 // pred_check
        %p294 = pneg %p293
      $region42: #{tpu_custom_call.1} parent=5 // pred_check_branch
        %296 = sbr.rel (%p294) target = $region44
      $region43: #{tpu_custom_call.1} parent=5 // pred_region
        %s297 = ssub.s32 %s15, 2
        // Predicated region
        $region45: #{tpu_custom_call.1} parent=43 // pred_check
          %p298 = pneg %p107
        $region46: #{tpu_custom_call.1} parent=43 // pred_check_branch
          %300 = sbr.rel (%p298) target = $region48
        $region47: #{tpu_custom_call.1} parent=43 // pred_region
          %s301 = sand.u32 %s92, 1
          %s302 = scalar_lea.sflag [#allocation4], %s301
          %s303 = sand.u32 %s92, 1
          %s304 = smul.addr %s303, 8
          %s305 = scalar_lea.vmem [#allocation7], %s304
          %306 = dma.done %s302, 128
        $region48: #{tpu_custom_call.1} parent=43 // pred_fallthru
          _
      $region44: #{tpu_custom_call.1} parent=5 // pred_fallthru
        _
    $region6: #{tpu_custom_call.1} parent=1 // loop_footer
      %s19 = sadd.s32 1, %s15
    $region7: #{tpu_custom_call.1} parent=1 // loop_footer_branch
      %14 = sbr.rel target = $region3
    $region8: #{tpu_custom_call.1} parent=1 // loop_exit
      _
    %307 = vsyncpa [#allocation3], 1
    %s308 = scalar_lea.sflag [#allocation3], 1
    %309 = vsyncpa %s308, 1
    %310 = vsyncpa [#allocation6], 1
    %s311 = scalar_lea.sflag [#allocation6], 1
    %312 = vsyncpa %s311, 1
    %313 = vsyncpa [#allocation4], 1
    %s314 = scalar_lea.sflag [#allocation4], 1
    %315 = vsyncpa %s314, 1

</llo_original>
